<compile_context>
chip_gen: v5e
topology: v5e:2x2
jax: 0.10.0
libtpu: 0.0.40
codegen_flags: <defaults>
</compile_context>

<pallas_src>
import numpy as np

import jax
import jax.numpy as jnp
from jax.experimental import pallas as pl
from jax.experimental.pallas import tpu as pltpu

TWO_PI = 2.0 * np.pi


# ---------------------------------------------------------------------------
# Pallas kernel: per-block complex multiply (pure VPU, HBM-bandwidth bound).
#   mcos/msin blocks: (TH, W)   -- shared across the TB field planes
#   fr/fi/or/oi blocks: (TB, TH, W)
# ---------------------------------------------------------------------------
def _apply_kernel(mcos_ref, msin_ref, fr_ref, fi_ref, or_ref, oi_ref):
    c = mcos_ref[...]            # (TH, W); broadcasts over the leading TB dim
    s = msin_ref[...]
    fr = fr_ref[...]             # (TB, TH, W)
    fi = fi_ref[...]
    or_ref[...] = fr * c - fi * s
    oi_ref[...] = fr * s + fi * c


# ---------------------------------------------------------------------------
# Tiling: (TB, TH) with W always at full lane extent.
#   TH: multiple of 8 dividing H (or full H)  -> obeys the (8, 128) rule,
#       no sublane padding on the shared cos/sin blocks.
#   TB: divisor of B*C packing planes so a field block is ~target_bytes.
# ---------------------------------------------------------------------------
def _choose_tiles(bc, h, w, itemsize=4, target_bytes=2 << 20, min_spatial_blocks=2):
    if h % 8 == 0:
        th_cands = [d for d in range(8, h + 1, 8) if h % d == 0]
    else:
        # TODO(synk): ragged spatial tiles for H not a multiple of 8.
        th_cands = [h]
    row_bytes = w * itemsize
    fitting = [d for d in th_cands if d * row_bytes <= target_bytes] or th_cands[:1]
    # prefer an even spatial-block count (v7x megacore balance), else largest
    even = [d for d in fitting if (h // d) % 2 == 0]
    th = (even or fitting)[-1]
    # guarantee >= 2 blocks on the spatial axis when possible
    if h // th < min_spatial_blocks:
        smaller = [d for d in th_cands if h // d >= min_spatial_blocks]
        if smaller:
            th = smaller[-1]

    tile_bytes = th * row_bytes
    tb_cap = max(1, target_bytes // tile_bytes)
    if h // th < min_spatial_blocks and bc > 1:
        # spatial axis cannot be split: keep >= 2 blocks on the row axis instead
        tb_cap = min(tb_cap, max(1, bc // 2))
    tb = max([d for d in range(1, bc + 1) if bc % d == 0 and d <= tb_cap], default=1)
    return tb, th


def _vmem_limit_bytes(tb, th, w, itemsize=4):
    block = tb * th * w * itemsize
    shared = th * w * itemsize
    est = 4 * 2 * block + 2 * 2 * shared   # 4 double-buffered field streams + 2 shared
    return int(min(48 << 20, max(32 << 20, 2 * est)))


def phase_mask_quantized(field_real, field_imag, phase_raw,
                         x_grid=None, y_grid=None, *,
                         D, levels=16, modulo=False, as_complex=True,
                         target_block_bytes=2 << 20):
    """Pallas implementation of PhaseMaskQuantized.forward.

    field_real / field_imag: (B, C, H, W) float32 real/imag parts of the field.
    phase_raw: (H, W) float32 trainable phase.
    x_grid / y_grid: (H, W) float32 coordinate grids (only needed if D is not None).
    Returns complex64 (B, C, H, W), or the (real, imag) float32 pair if
    as_complex=False.
    """
    B, C, H, W = field_real.shape
    BC = B * C
    fr = field_real.reshape(BC, H, W).astype(jnp.float32)
    fi = field_imag.reshape(BC, H, W).astype(jnp.float32)

    # ---- (H, W)-only prep, once per call, in plain XLA ----
    phase = phase_raw.astype(jnp.float32)
    if modulo:
        # torch.remainder(x, 2*pi) == x - 2*pi*floor(x / (2*pi))
        phase = phase - TWO_PI * jnp.floor(phase / TWO_PI)
    step = TWO_PI / levels
    phase_quant = jnp.round(phase / step) * step
    mcos = jnp.cos(phase_quant)
    msin = jnp.sin(phase_quant)
    if D is not None:
        r2 = x_grid * x_grid + y_grid * y_grid
        mask = (r2 <= (0.5 * D) ** 2).astype(mcos.dtype)
        mcos = mcos * mask
        msin = msin * mask

    # ---- streamed, lane-dense complex multiply over (B*C, H, W) ----
    TB, TH = _choose_tiles(BC, H, W, target_bytes=target_block_bytes)
    grid = (H // TH, BC // TB)          # spatial outer -> shared cos/sin blocks
                                        # stay resident across the inner row loop
    shared_spec = pl.BlockSpec((TH, W), lambda j, i: (j, 0))
    field_spec = pl.BlockSpec((TB, TH, W), lambda j, i: (i, j, 0))

    out_r, out_i = pl.pallas_call(
        _apply_kernel,
        out_shape=(jax.ShapeDtypeStruct((BC, H, W), jnp.float32),
                   jax.ShapeDtypeStruct((BC, H, W), jnp.float32)),
        grid_spec=pltpu.PrefetchScalarGridSpec(
            num_scalar_prefetch=0,
            grid=grid,
            in_specs=[shared_spec, shared_spec, field_spec, field_spec],
            out_specs=(field_spec, field_spec),
        ),
        compiler_params=pltpu.CompilerParams(
            dimension_semantics=("parallel", "parallel"),
            vmem_limit_bytes=_vmem_limit_bytes(TB, TH, W)),
    )(mcos, msin, fr, fi)

    out_r = out_r.reshape(B, C, H, W)
    out_i = out_i.reshape(B, C, H, W)
    if not as_complex:
        return out_r, out_i
    # TODO(synk): no zero-copy float32-pair -> complex64 bitcast exists in XLA;
    # this pack is one extra elementwise pass over the output.
    return jax.lax.complex(out_r, out_i)


# ---------------------------------------------------------------------------
# Pure-JAX reference mirroring the PyTorch module semantics.
# ---------------------------------------------------------------------------
def _reference(field_real, field_imag, phase_raw, x_grid, y_grid,
               *, D, levels, modulo):
    phase = phase_raw
    if modulo:
        phase = phase - TWO_PI * jnp.floor(phase / TWO_PI)
    step = TWO_PI / levels
    pq = jnp.round(phase / step) * step
    ph = jnp.exp(1j * pq.astype(jnp.complex64))
    field = jax.lax.complex(field_real, field_imag)
    if D is not None:
        mask = ((x_grid ** 2 + y_grid ** 2) <= (D / 2) ** 2).astype(jnp.float32)
        field = field * mask[None, None, :, :]
    return field * ph[None, None, :, :]


if __name__ == "__main__":
    B, C, H, W = 2, 4, 16, 16
    levels = 16

    key = jax.random.PRNGKey(0)
    k1, k2, k3 = jax.random.split(key, 3)

    # coordinate grids spanning [-1, 1] x [-1, 1]
    xs = jnp.linspace(-1.0, 1.0, W, dtype=jnp.float32)
    ys = jnp.linspace(-1.0, 1.0, H, dtype=jnp.float32)
    y_grid, x_grid = jnp.meshgrid(ys, xs, indexing="ij")

    # deterministic parameter init: phase_raw = 2*pi * U(0,1), shape (H, W)
    phase_raw = TWO_PI * jax.random.uniform(k1, (H, W), dtype=jnp.float32)

    # deterministic complex input field, carried as real/imag float32 parts
    field_real = jax.random.normal(k2, (B, C, H, W), dtype=jnp.float32)
    field_imag = jax.random.normal(k3, (B, C, H, W), dtype=jnp.float32)

    # exercise both the pupil-mask path and the modulo (no-mask) path
    for D, modulo in ((1.0, False), (None, True)):
        out = phase_mask_quantized(
            field_real, field_imag, phase_raw,
            x_grid if D is not None else None,
            y_grid if D is not None else None,
            D=D, levels=levels, modulo=modulo)
        out = jax.block_until_ready(out)
        ref = _reference(field_real, field_imag, phase_raw, x_grid, y_grid,
                         D=D, levels=levels, modulo=modulo)
        np.testing.assert_allclose(np.asarray(out), np.asarray(ref),
                                   rtol=1e-5, atol=1e-5)

    # two-plane output path (skips the complex-pack pass)
    out_r, out_i = phase_mask_quantized(field_real, field_imag, phase_raw,
                                        x_grid, y_grid, D=1.0, levels=levels,
                                        modulo=False, as_complex=False)
    jax.block_until_ready((out_r, out_i))
    ref = _reference(field_real, field_imag, phase_raw, x_grid, y_grid,
                     D=1.0, levels=levels, modulo=False)
    np.testing.assert_allclose(np.asarray(out_r), np.asarray(ref.real),
                               rtol=1e-5, atol=1e-5)
    np.testing.assert_allclose(np.asarray(out_i), np.asarray(ref.imag),
                               rtol=1e-5, atol=1e-5)

    print("KERNEL_OK")
</pallas_src>

<mosaic_0001>
module attributes {stable_mosaic.version = 11 : i64} {
  func.func @_apply_kernel(%arg0: i32, %arg1: i32, %arg2: memref<8x16xf32, #tpu.memory_space<vmem>>, %arg3: memref<8x16xf32, #tpu.memory_space<vmem>>, %arg4: memref<8x8x16xf32, #tpu.memory_space<vmem>>, %arg5: memref<8x8x16xf32, #tpu.memory_space<vmem>>, %arg6: memref<8x8x16xf32, #tpu.memory_space<vmem>>, %arg7: memref<8x8x16xf32, #tpu.memory_space<vmem>>) attributes {dimension_semantics = [#tpu.dimension_semantics<parallel>, #tpu.dimension_semantics<parallel>], iteration_bounds = array<i64: 2, 1>, scalar_prefetch = 0 : i64, scratch_operands = 0 : i64, tpu.core_type = #tpu.core_type<tc>, window_params = [{transform_indices = @transform_0, window_bounds = array<i64: 8, 16>}, {transform_indices = @transform_1, window_bounds = array<i64: 8, 16>}, {transform_indices = @transform_2, window_bounds = array<i64: 8, 8, 16>}, {transform_indices = @transform_3, window_bounds = array<i64: 8, 8, 16>}, {transform_indices = @transform_4, window_bounds = array<i64: 8, 8, 16>}, {transform_indices = @transform_5, window_bounds = array<i64: 8, 8, 16>}]} {
    %c0 = arith.constant 0 : index
    %c0_0 = arith.constant 0 : index
    %0 = vector.load %arg2[%c0, %c0_0] : memref<8x16xf32, #tpu.memory_space<vmem>>, vector<8x16xf32>
    %c0_1 = arith.constant 0 : index
    %c0_2 = arith.constant 0 : index
    %1 = vector.load %arg3[%c0_1, %c0_2] : memref<8x16xf32, #tpu.memory_space<vmem>>, vector<8x16xf32>
    %c0_3 = arith.constant 0 : index
    %c0_4 = arith.constant 0 : index
    %c0_5 = arith.constant 0 : index
    %2 = vector.load %arg4[%c0_3, %c0_4, %c0_5] : memref<8x8x16xf32, #tpu.memory_space<vmem>>, vector<8x8x16xf32>
    %c0_6 = arith.constant 0 : index
    %c0_7 = arith.constant 0 : index
    %c0_8 = arith.constant 0 : index
    %3 = vector.load %arg5[%c0_6, %c0_7, %c0_8] : memref<8x8x16xf32, #tpu.memory_space<vmem>>, vector<8x8x16xf32>
    %4 = vector.shape_cast %0 : vector<8x16xf32> to vector<1x8x16xf32>
    %5 = vector.broadcast %4 : vector<1x8x16xf32> to vector<8x8x16xf32>
    %6 = arith.mulf %2, %5 : vector<8x8x16xf32>
    %7 = vector.shape_cast %1 : vector<8x16xf32> to vector<1x8x16xf32>
    %8 = vector.broadcast %7 : vector<1x8x16xf32> to vector<8x8x16xf32>
    %9 = arith.mulf %3, %8 : vector<8x8x16xf32>
    %10 = arith.subf %6, %9 : vector<8x8x16xf32>
    %c0_9 = arith.constant 0 : index
    %c0_10 = arith.constant 0 : index
    %c0_11 = arith.constant 0 : index
    %11 = vector.load %arg6[%c0_9, %c0_10, %c0_11] : memref<8x8x16xf32, #tpu.memory_space<vmem>>, vector<8x8x16xf32>
    tpu.vector_store %arg6[%c0_9, %c0_10, %c0_11], %10 {strides = array<i32>} : memref<8x8x16xf32, #tpu.memory_space<vmem>>, vector<8x8x16xf32>,
    %12 = vector.shape_cast %1 : vector<8x16xf32> to vector<1x8x16xf32>
    %13 = vector.broadcast %12 : vector<1x8x16xf32> to vector<8x8x16xf32>
    %14 = arith.mulf %2, %13 : vector<8x8x16xf32>
    %15 = vector.shape_cast %0 : vector<8x16xf32> to vector<1x8x16xf32>
    %16 = vector.broadcast %15 : vector<1x8x16xf32> to vector<8x8x16xf32>
    %17 = arith.mulf %3, %16 : vector<8x8x16xf32>
    %18 = arith.addf %14, %17 : vector<8x8x16xf32>
    %c0_12 = arith.constant 0 : index
    %c0_13 = arith.constant 0 : index
    %c0_14 = arith.constant 0 : index
    %19 = vector.load %arg7[%c0_12, %c0_13, %c0_14] : memref<8x8x16xf32, #tpu.memory_space<vmem>>, vector<8x8x16xf32>
    tpu.vector_store %arg7[%c0_12, %c0_13, %c0_14], %18 {strides = array<i32>} : memref<8x8x16xf32, #tpu.memory_space<vmem>>, vector<8x8x16xf32>,
    return
  }
  func.func @transform_0(%arg0: i32, %arg1: i32) -> (i32, i32) {
    %c0_i32 = arith.constant 0 : i32
    %c0_i32_0 = arith.constant 0 : i32
    return %arg0, %c0_i32 : i32, i32
  }
  func.func @transform_1(%arg0: i32, %arg1: i32) -> (i32, i32) {
    %c0_i32 = arith.constant 0 : i32
    %c0_i32_0 = arith.constant 0 : i32
    return %arg0, %c0_i32 : i32, i32
  }
  func.func @transform_2(%arg0: i32, %arg1: i32) -> (i32, i32, i32) {
    %c0_i32 = arith.constant 0 : i32
    %c0_i32_0 = arith.constant 0 : i32
    return %arg1, %arg0, %c0_i32 : i32, i32, i32
  }
  func.func @transform_3(%arg0: i32, %arg1: i32) -> (i32, i32, i32) {
    %c0_i32 = arith.constant 0 : i32
    %c0_i32_0 = arith.constant 0 : i32
    return %arg1, %arg0, %c0_i32 : i32, i32, i32
  }
  func.func @transform_4(%arg0: i32, %arg1: i32) -> (i32, i32, i32) {
    %c0_i32 = arith.constant 0 : i32
    %c0_i32_0 = arith.constant 0 : i32
    return %arg1, %arg0, %c0_i32 : i32, i32, i32
  }
  func.func @transform_5(%arg0: i32, %arg1: i32) -> (i32, i32, i32) {
    %c0_i32 = arith.constant 0 : i32
    %c0_i32_0 = arith.constant 0 : i32
    return %arg1, %arg0, %c0_i32 : i32, i32, i32
  }
}

</mosaic_0001>

<llo_original>
// kernel: tpu_custom_call.1
$region0: #{tpu_custom_call.1}
  #allocation0 [shape = 'u32[]', space=smem, size = 0x4, offset = 0x4, fixed_abs, tag = 'smem constant byte address 0x4 - core index']
  #allocation1 [shape = 'u32[72,128]{1,0:T(1,128)}', space=vmem, size = 0x9000, scoped, tag = 'internal scratch']
  %s0 = inlined_call_operand.hbm [shape: f32[16,16], index: 0, kind: input, shape index: {}]
  %s1 = inlined_call_operand.hbm [shape: f32[16,16], index: 1, kind: input, shape index: {}]
  %s2 = inlined_call_operand.hbm [shape: f32[8,16,16], index: 2, kind: input, shape index: {}]
  %s3 = inlined_call_operand.hbm [shape: f32[8,16,16], index: 3, kind: input, shape index: {}]
  %s4 = inlined_call_operand.hbm [shape: f32[8,16,16], index: 4, kind: output, shape index: {0}]
  %s5 = inlined_call_operand.hbm [shape: f32[8,16,16], index: 5, kind: output, shape index: {1}]
  %6 = xla_tuple %s4, %s5
  %s7 = sld [smem:[#allocation0]]
  $region73: #{tpu_custom_call.1} parent=0
    _
  %s9 = ssub.s32 1, %s7
  %s10 = scalar_select 0, %s9, %s7
  $region1: #{tpu_custom_call.1} parent=0
    #allocation2 [shape = 'u8[8192]{0}', space=vmem, size = 0x2000, scoped, tag = 'input window, operand 0']
    #allocation3 [shape = 's32[2]{0}', space=sflag, size = 0x8, scoped, tag = 'scoped memory for tpu_custom_call.1']
    #allocation4 [shape = 's32[2]{0}', space=sflag, size = 0x8, scoped, tag = 'scoped memory for tpu_custom_call.1']
    #allocation5 [shape = 'u8[8192]{0}', space=vmem, size = 0x2000, scoped, tag = 'input window, operand 1']
    #allocation6 [shape = 's32[2]{0}', space=sflag, size = 0x8, scoped, tag = 'scoped memory for tpu_custom_call.1']
    #allocation7 [shape = 'u8[65536]{0}', space=vmem, size = 0x10000, scoped, tag = 'input window, operand 2']
    #allocation8 [shape = 'u8[65536]{0}', space=vmem, size = 0x10000, scoped, tag = 'input window, operand 3']
    #allocation9 [shape = 's32[2]{0}', space=sflag, size = 0x8, scoped, tag = 'scoped memory for tpu_custom_call.1']
    #allocation10 [shape = 'u8[65536]{0}', space=vmem, size = 0x10000, scoped, tag = 'output window, operand 0']
    #allocation11 [shape = 'u8[65536]{0}', space=vmem, size = 0x10000, scoped, tag = 'output window, operand 1']
    #allocation12 [shape = 's32[2]{0}', space=sflag, size = 0x8, scoped, tag = 'scoped memory for tpu_custom_call.1']
    %11 = vsyncpa [#allocation3], 0
    %s12 = scalar_lea.sflag [#allocation3], 1
    %13 = vsyncpa %s12, 0
    %14 = vsyncpa [#allocation6], 0
    %s15 = scalar_lea.sflag [#allocation6], 1
    %16 = vsyncpa %s15, 0
    %17 = vsyncpa [#allocation9], 0
    %s18 = scalar_lea.sflag [#allocation9], 1
    %19 = vsyncpa %s18, 0
    %20 = vsyncpa [#allocation4], 0
    %s21 = scalar_lea.sflag [#allocation4], 1
    %22 = vsyncpa %s21, 0
    %23 = vsyncpa [#allocation12], 0
    %s24 = scalar_lea.sflag [#allocation12], 1
    %25 = vsyncpa %s24, 0
    loop: start=0, step=1, limit=4
    $region2: #{tpu_custom_call.1} parent=1 // loop_pre_header
      _
    $region3: #{tpu_custom_call.1} parent=1 // loop_header
      %s27 = sphi 0, %s31
      %p28 = scmp.ge.s32.totalorder %s27, 4
      %s34 = sphi 0, %s46
      %s35 = sphi 0, %s42
      %s36 = sphi 0, %s34
      %s37 = sphi 0, %s35
      %s38 = sphi 0, %s36
      %s39 = sphi 0, %s37
      %s49 = sphi 0, %s51
      %s52 = sphi 0, %s49
      %s53 = sphi 0, %s52
      %s69 = sphi 0, %s53
      %s75 = sphi 0, %s77
      %s78 = sphi 0, %s75
      %s79 = sphi 0, %s78
      %s95 = sphi 0, %s79
      %s103 = sphi 0, %s105
      %s106 = sphi 0, %s103
      %s107 = sphi 0, %s106
      %s123 = sphi 0, %s107
      %s131 = sphi 0, %s133
      %s134 = sphi 0, %s131
      %s135 = sphi 0, %s134
      %s151 = sphi 0, %s135
      %s159 = sphi 0, %s161
      %s162 = sphi 0, %s159
      %s163 = sphi 0, %s162
      %s179 = sphi 0, %s163
      %s187 = sphi 0, %s189
      %s190 = sphi 0, %s187
      %s191 = sphi 0, %s190
      %s207 = sphi 0, %s191
    $region4: #{tpu_custom_call.1} parent=1 // loop_header_branch
      %30 = sbr.rel (%p28) target = $region8
    $region5: #{tpu_custom_call.1} parent=1 // loop_body
      %s32 = ssub.s32 %s27, 1
      %s33 = ssub.s32 %s27, 2
      %s40 = sadd.s32 1, %s35
      %p41 = scmp.ge.s32.totalorder %s40, 1
      %s42 = scalar_select %p41, 0, %s40
      %s43 = sadd.s32 1, %s34
      %s44 = scalar_select %p41, %s43, %s34
      %p45 = scmp.ge.s32.totalorder %s44, 2
      %s46 = scalar_select %p45, 0, %s44
      %s47 = ssub.s32 %s34, %s46
      %p48 = scmp.eq.s32.totalorder %s47, 0
      %s50 = sadd.s32 %s49, 1
      %s51 = scalar_select %p48, %s49, %s50
      %p54 = pneg %p48
      %p55 = scmp.eq.s32.totalorder %s27, 1
      %p56 = por %p54, %p55
      %p57 = scmp.ne.s32.totalorder %s49, %s52
      %p58 = scmp.eq.s32.totalorder %s27, 0
      %p59 = por %p57, %p58
      %p60 = scmp.ne.s32.totalorder %s49, %s52
      %p61 = scmp.eq.s32.totalorder %s32, 1
      %p62 = por %p60, %p61
      %p63 = scmp.ne.s32.totalorder %s52, %s53
      %p64 = scmp.eq.s32.totalorder %s32, 0
      %p65 = por %p63, %p64
      %p66 = scmp.ne.s32.totalorder %s52, %s53
      %p67 = scmp.eq.s32.totalorder %s33, 1
      %p68 = por %p66, %p67
      %p70 = scmp.ne.s32.totalorder %s53, %s69
      %p71 = scmp.eq.s32.totalorder %s33, 0
      %p72 = por %p70, %p71
      %s73 = ssub.s32 %s34, %s46
      %p74 = scmp.eq.s32.totalorder %s73, 0
      %s76 = sadd.s32 %s75, 1
      %s77 = scalar_select %p74, %s75, %s76
      %p80 = pneg %p74
      %p81 = scmp.eq.s32.totalorder %s27, 1
      %p82 = por %p80, %p81
      %p83 = scmp.ne.s32.totalorder %s75, %s78
      %p84 = scmp.eq.s32.totalorder %s27, 0
      %p85 = por %p83, %p84
      %p86 = scmp.ne.s32.totalorder %s75, %s78
      %p87 = scmp.eq.s32.totalorder %s32, 1
      %p88 = por %p86, %p87
      %p89 = scmp.ne.s32.totalorder %s78, %s79
      %p90 = scmp.eq.s32.totalorder %s32, 0
      %p91 = por %p89, %p90
      %p92 = scmp.ne.s32.totalorder %s78, %s79
      %p93 = scmp.eq.s32.totalorder %s33, 1
      %p94 = por %p92, %p93
      %p96 = scmp.ne.s32.totalorder %s79, %s95
      %p97 = scmp.eq.s32.totalorder %s33, 0
      %p98 = por %p96, %p97
      %s99 = ssub.s32 %s35, %s42
      %s100 = ssub.s32 %s34, %s46
      %s101 = sor.u32 %s99, %s100
      %p102 = scmp.eq.s32.totalorder %s101, 0
      %s104 = sadd.s32 %s103, 1
      %s105 = scalar_select %p102, %s103, %s104
      %p108 = pneg %p102
      %p109 = scmp.eq.s32.totalorder %s27, 1
      %p110 = por %p108, %p109
      %p111 = scmp.ne.s32.totalorder %s103, %s106
      %p112 = scmp.eq.s32.totalorder %s27, 0
      %p113 = por %p111, %p112
      %p114 = scmp.ne.s32.totalorder %s103, %s106
      %p115 = scmp.eq.s32.totalorder %s32, 1
      %p116 = por %p114, %p115
      %p117 = scmp.ne.s32.totalorder %s106, %s107
      %p118 = scmp.eq.s32.totalorder %s32, 0
      %p119 = por %p117, %p118
      %p120 = scmp.ne.s32.totalorder %s106, %s107
      %p121 = scmp.eq.s32.totalorder %s33, 1
      %p122 = por %p120, %p121
      %p124 = scmp.ne.s32.totalorder %s107, %s123
      %p125 = scmp.eq.s32.totalorder %s33, 0
      %p126 = por %p124, %p125
      %s127 = ssub.s32 %s35, %s42
      %s128 = ssub.s32 %s34, %s46
      %s129 = sor.u32 %s127, %s128
      %p130 = scmp.eq.s32.totalorder %s129, 0
      %s132 = sadd.s32 %s131, 1
      %s133 = scalar_select %p130, %s131, %s132
      %p136 = pneg %p130
      %p137 = scmp.eq.s32.totalorder %s27, 1
      %p138 = por %p136, %p137
      %p139 = scmp.ne.s32.totalorder %s131, %s134
      %p140 = scmp.eq.s32.totalorder %s27, 0
      %p141 = por %p139, %p140
      %p142 = scmp.ne.s32.totalorder %s131, %s134
      %p143 = scmp.eq.s32.totalorder %s32, 1
      %p144 = por %p142, %p143
      %p145 = scmp.ne.s32.totalorder %s134, %s135
      %p146 = scmp.eq.s32.totalorder %s32, 0
      %p147 = por %p145, %p146
      %p148 = scmp.ne.s32.totalorder %s134, %s135
      %p149 = scmp.eq.s32.totalorder %s33, 1
      %p150 = por %p148, %p149
      %p152 = scmp.ne.s32.totalorder %s135, %s151
      %p153 = scmp.eq.s32.totalorder %s33, 0
      %p154 = por %p152, %p153
      %s155 = ssub.s32 %s35, %s42
      %s156 = ssub.s32 %s34, %s46
      %s157 = sor.u32 %s155, %s156
      %p158 = scmp.eq.s32.totalorder %s157, 0
      %s160 = sadd.s32 %s159, 1
      %s161 = scalar_select %p158, %s159, %s160
      %p164 = pneg %p158
      %p165 = scmp.eq.s32.totalorder %s27, 1
      %p166 = por %p164, %p165
      %p167 = scmp.ne.s32.totalorder %s159, %s162
      %p168 = scmp.eq.s32.totalorder %s27, 0
      %p169 = por %p167, %p168
      %p170 = scmp.ne.s32.totalorder %s159, %s162
      %p171 = scmp.eq.s32.totalorder %s32, 1
      %p172 = por %p170, %p171
      %p173 = scmp.ne.s32.totalorder %s162, %s163
      %p174 = scmp.eq.s32.totalorder %s32, 0
      %p175 = por %p173, %p174
      %p176 = scmp.ne.s32.totalorder %s162, %s163
      %p177 = scmp.eq.s32.totalorder %s33, 1
      %p178 = por %p176, %p177
      %p180 = scmp.ne.s32.totalorder %s163, %s179
      %p181 = scmp.eq.s32.totalorder %s33, 0
      %p182 = por %p180, %p181
      %s183 = ssub.s32 %s35, %s42
      %s184 = ssub.s32 %s34, %s46
      %s185 = sor.u32 %s183, %s184
      %p186 = scmp.eq.s32.totalorder %s185, 0
      %s188 = sadd.s32 %s187, 1
      %s189 = scalar_select %p186, %s187, %s188
      %p192 = pneg %p186
      %p193 = scmp.eq.s32.totalorder %s27, 1
      %p194 = por %p192, %p193
      %p195 = scmp.ne.s32.totalorder %s187, %s190
      %p196 = scmp.eq.s32.totalorder %s27, 0
      %p197 = por %p195, %p196
      %p198 = scmp.ne.s32.totalorder %s187, %s190
      %p199 = scmp.eq.s32.totalorder %s32, 1
      %p200 = por %p198, %p199
      %p201 = scmp.ne.s32.totalorder %s190, %s191
      %p202 = scmp.eq.s32.totalorder %s32, 0
      %p203 = por %p201, %p202
      %p204 = scmp.ne.s32.totalorder %s190, %s191
      %p205 = scmp.eq.s32.totalorder %s33, 1
      %p206 = por %p204, %p205
      %p208 = scmp.ne.s32.totalorder %s191, %s207
      %p209 = scmp.eq.s32.totalorder %s33, 0
      %p210 = por %p208, %p209
      %p211 = scmp.le.s32.totalorder 1, %s27
      %p212 = scmp.lt.s32.totalorder %s27, 3
      %p213 = pnand %p211, %p212
      %p214 = pneg %p213
      // Predicated region
      $region9: #{tpu_custom_call.1} parent=5 // pred_check
        _
      $region10: #{tpu_custom_call.1} parent=5 // pred_check_branch
        %216 = sbr.rel (%p213) target = $region12
      $region11: #{tpu_custom_call.1} parent=5 // pred_region
        %s217 = ssub.s32 %s27, 1
      $region12: #{tpu_custom_call.1} parent=5 // pred_fallthru
        _
      %p218 = scmp.lt.s32.totalorder %s27, 2
      // Predicated region
      $region13: #{tpu_custom_call.1} parent=5 // pred_check
        %p219 = pneg %p218
      $region14: #{tpu_custom_call.1} parent=5 // pred_check_branch
        %221 = sbr.rel (%p219) target = $region16
      $region15: #{tpu_custom_call.1} parent=5 // pred_region
        // Predicated region
        $region17: #{tpu_custom_call.1} parent=15 // pred_check
          %p222 = pneg %p59
        $region18: #{tpu_custom_call.1} parent=15 // pred_check_branch
          %224 = sbr.rel (%p222) target = $region20
        $region19: #{tpu_custom_call.1} parent=15 // pred_region
          %s225 = sand.u32 %s49, 1
          %s226 = scalar_lea.sflag [#allocation3], %s225
          %s227 = sand.u32 %s49, 1
          %s228 = smul.addr %s227, 8
          %s229 = scalar_lea.vmem [#allocation2], %s228
          %231 = vsyncadd %s226, 0
          %s232 = smul.addr %s34, 8
          %s233 = scalar_lea.hbm %s0, %s232
          %s235 = sshll.u32 %s233, 4
          %s236 = int_to_ptr.hbm [resolvable:$true] %s235
          %s237 = sshll.u32 %s229, 4
          %s238 = int_to_ptr.vmem [resolvable:$true] %s237
          %240 = dma.hbm_to_vmem [thread:$0]  %s236, 128, %s238, %s226
        $region20: #{tpu_custom_call.1} parent=15 // pred_fallthru
          _
        // Predicated region
        $region21: #{tpu_custom_call.1} parent=15 // pred_check
          %p241 = pneg %p85
        $region22: #{tpu_custom_call.1} parent=15 // pred_check_branch
          %243 = sbr.rel (%p241) target = $region24
        $region23: #{tpu_custom_call.1} parent=15 // pred_region
          %s244 = sand.u32 %s27, 1
          %s245 = scalar_lea.sflag [#allocation6], %s244
          %s246 = sand.u32 %s75, 1
          %s247 = smul.addr %s246, 8
          %s248 = scalar_lea.vmem [#allocation5], %s247
          %250 = vsyncadd %s245, 0
          %s251 = smul.addr %s34, 8
          %s252 = scalar_lea.hbm %s1, %s251
          %s254 = sshll.u32 %s252, 4
          %s255 = int_to_ptr.hbm [resolvable:$true] %s254
          %s256 = sshll.u32 %s248, 4
          %s257 = int_to_ptr.vmem [resolvable:$true] %s256
          %259 = dma.hbm_to_vmem [thread:$0]  %s255, 128, %s257, %s245
        $region24: #{tpu_custom_call.1} parent=15 // pred_fallthru
          _
        // Predicated region
        $region25: #{tpu_custom_call.1} parent=15 // pred_check
          %p260 = pneg %p113
        $region26: #{tpu_custom_call.1} parent=15 // pred_check_branch
          %262 = sbr.rel (%p260) target = $region28
        $region27: #{tpu_custom_call.1} parent=15 // pred_region
          %s263 = sand.u32 %s27, 1
          %s264 = scalar_lea.sflag [#allocation6], %s263
          %s265 = sand.u32 %s103, 1
          %s266 = smul.addr %s265, 64
          %s267 = scalar_lea.vmem [#allocation7], %s266
          %s268 = smul.u32 8, %s35
          %270 = vsyncadd %s264, 0
          %s271 = smul.addr %s268, 2
          %s272 = sadd.s32 %s34, %s271
          %s273 = smul.addr %s272, 8
          %s274 = scalar_lea.hbm %s2, %s273
          %s275 = sshll.u32 %s274, 4
          %s276 = int_to_ptr.hbm [resolvable:$true] %s275
          %s277 = sshll.u32 %s267, 4
          %s278 = int_to_ptr.vmem [resolvable:$true] %s277
          %283 = dma.hbm_to_vmem [thread:$0]  %s276, 1024, %s278, %s264, 256, 128, 8
        $region28: #{tpu_custom_call.1} parent=15 // pred_fallthru
          _
        // Predicated region
        $region29: #{tpu_custom_call.1} parent=15 // pred_check
          %p284 = pneg %p141
        $region30: #{tpu_custom_call.1} parent=15 // pred_check_branch
          %286 = sbr.rel (%p284) target = $region32
        $region31: #{tpu_custom_call.1} parent=15 // pred_region
          %s287 = sand.u32 %s131, 1
          %s288 = scalar_lea.sflag [#allocation9], %s287
          %s289 = sand.u32 %s131, 1
          %s290 = smul.addr %s289, 64
          %s291 = scalar_lea.vmem [#allocation8], %s290
          %s292 = smul.u32 8, %s35
          %294 = vsyncadd %s288, 0
          %s295 = smul.addr %s292, 2
          %s296 = sadd.s32 %s34, %s295
          %s297 = smul.addr %s296, 8
          %s298 = scalar_lea.hbm %s3, %s297
          %s299 = sshll.u32 %s298, 4
          %s300 = int_to_ptr.hbm [resolvable:$true] %s299
          %s301 = sshll.u32 %s291, 4
          %s302 = int_to_ptr.vmem [resolvable:$true] %s301
          %307 = dma.hbm_to_vmem [thread:$0]  %s300, 1024, %s302, %s288, 256, 128, 8
        $region32: #{tpu_custom_call.1} parent=15 // pred_fallthru
          _
      $region16: #{tpu_custom_call.1} parent=5 // pred_fallthru
        _
      %p308 = scmp.le.s32.totalorder 1, %s27
      %p309 = scmp.lt.s32.totalorder %s27, 3
      %p310 = pnand %p308, %p309
      %p311 = pneg %p310
      // Predicated region
      $region33: #{tpu_custom_call.1} parent=5 // pred_check
        _
      $region34: #{tpu_custom_call.1} parent=5 // pred_check_branch
        %313 = sbr.rel (%p310) target = $region36
      $region35: #{tpu_custom_call.1} parent=5 // pred_region
        %s314 = ssub.s32 %s27, 1
        %s315 = sand.u32 %s52, 1
        %s316 = scalar_lea.sflag [#allocation3], %s315
        %s317 = sand.u32 %s52, 1
        %s318 = smul.addr %s317, 8
        %s319 = scalar_lea.vmem [#allocation2], %s318
        // Predicated region
        $region37: #{tpu_custom_call.1} parent=35 // pred_check
          %p320 = pneg %p65
        $region38: #{tpu_custom_call.1} parent=35 // pred_check_branch
          %322 = sbr.rel (%p320) target = $region40
        $region39: #{tpu_custom_call.1} parent=35 // pred_region
          %324 = dma.done %s316, 128
        $region40: #{tpu_custom_call.1} parent=35 // pred_fallthru
          _
        %s325 = sand.u32 %s32, 1
        %s326 = scalar_lea.sflag [#allocation6], %s325
        %s327 = sand.u32 %s78, 1
        %s328 = smul.addr %s327, 8
        %s329 = scalar_lea.vmem [#allocation5], %s328
        // Predicated region
        $region41: #{tpu_custom_call.1} parent=35 // pred_check
          %p330 = pneg %p91
        $region42: #{tpu_custom_call.1} parent=35 // pred_check_branch
          %332 = sbr.rel (%p330) target = $region44
        $region43: #{tpu_custom_call.1} parent=35 // pred_region
          %334 = dma.done %s326, 128
        $region44: #{tpu_custom_call.1} parent=35 // pred_fallthru
          _
        %s335 = sand.u32 %s32, 1
        %s336 = scalar_lea.sflag [#allocation6], %s335
        %s337 = sand.u32 %s106, 1
        %s338 = smul.addr %s337, 64
        %s339 = scalar_lea.vmem [#allocation7], %s338
        // Predicated region
        $region45: #{tpu_custom_call.1} parent=35 // pred_check
          %p340 = pneg %p119
        $region46: #{tpu_custom_call.1} parent=35 // pred_check_branch
          %342 = sbr.rel (%p340) target = $region48
        $region47: #{tpu_custom_call.1} parent=35 // pred_region
          %344 = dma.done %s336, 1024
        $region48: #{tpu_custom_call.1} parent=35 // pred_fallthru
          _
        %s345 = sand.u32 %s134, 1
        %s346 = scalar_lea.sflag [#allocation9], %s345
        %s347 = sand.u32 %s134, 1
        %s348 = smul.addr %s347, 64
        %s349 = scalar_lea.vmem [#allocation8], %s348
        // Predicated region
        $region49: #{tpu_custom_call.1} parent=35 // pred_check
          %p350 = pneg %p147
        $region50: #{tpu_custom_call.1} parent=35 // pred_check_branch
          %352 = sbr.rel (%p350) target = $region52
        $region51: #{tpu_custom_call.1} parent=35 // pred_region
          %354 = dma.done %s346, 1024
        $region52: #{tpu_custom_call.1} parent=35 // pred_fallthru
          _
        %s355 = sand.u32 %s52, 1
        %s356 = scalar_lea.sflag [#allocation3], %s355
        %s357 = sand.u32 %s52, 1
        %s358 = smul.addr %s357, 8
        %s359 = scalar_lea.vmem [#allocation2], %s358
        %p360 = pneg %p65
        %p361 = pneg %p62
        %s362 = sand.u32 %s32, 1
        %s363 = scalar_lea.sflag [#allocation6], %s362
        %s364 = sand.u32 %s78, 1
        %s365 = smul.addr %s364, 8
        %s366 = scalar_lea.vmem [#allocation5], %s365
        %p367 = pneg %p91
        %p368 = pneg %p88
        %s369 = sand.u32 %s32, 1
        %s370 = scalar_lea.sflag [#allocation6], %s369
        %s371 = sand.u32 %s106, 1
        %s372 = smul.addr %s371, 64
        %s373 = scalar_lea.vmem [#allocation7], %s372
        %p374 = pneg %p119
        %p375 = pneg %p116
        %s376 = sand.u32 %s134, 1
        %s377 = scalar_lea.sflag [#allocation9], %s376
        %s378 = sand.u32 %s134, 1
        %s379 = smul.addr %s378, 64
        %s380 = scalar_lea.vmem [#allocation8], %s379
        %p381 = pneg %p147
        %p382 = pneg %p144
        %p383 = pneg %p175
        %p384 = pneg %p172
        %s385 = sand.u32 %s162, 1
        %s386 = scalar_lea.sflag [#allocation4], %s385
        %s387 = sand.u32 %s162, 1
        %s388 = smul.addr %s387, 64
        %s389 = scalar_lea.vmem [#allocation10], %s388
        %p390 = pneg %p203
        %p391 = pneg %p200
        %s392 = sand.u32 %s190, 1
        %s393 = scalar_lea.sflag [#allocation12], %s392
        %s394 = sand.u32 %s190, 1
        %s395 = smul.addr %s394, 64
        %s396 = scalar_lea.vmem [#allocation11], %s395
        %s397 = smul.u32 8, %s37
        %s398 = smul.u32 8, %s37
        %s399 = smul.u32 8, %s37
        %s400 = smul.u32 8, %s37
        %v401 = vld [vmem:[%s319] sm:$0xff]
        %v402 = vld [vmem:[%s329] sm:$0xff]
        %v403 = vld [vmem:[%s339] sm:$0xff]
        %v404 = vld [vmem:[%s339 + $0x8] sm:$0xff]
        %v405 = vld [vmem:[%s339 + $0x10] sm:$0xff]
        %v406 = vld [vmem:[%s339 + $0x18] sm:$0xff]
        %v407 = vld [vmem:[%s339 + $0x20] sm:$0xff]
        %v408 = vld [vmem:[%s339 + $0x28] sm:$0xff]
        %v409 = vld [vmem:[%s339 + $0x30] sm:$0xff]
        %v410 = vld [vmem:[%s339 + $0x38] sm:$0xff]
        %v411 = vld [vmem:[%s349] sm:$0xff]
        %v412 = vld [vmem:[%s349 + $0x8] sm:$0xff]
        %v413 = vld [vmem:[%s349 + $0x10] sm:$0xff]
        %v414 = vld [vmem:[%s349 + $0x18] sm:$0xff]
        %v415 = vld [vmem:[%s349 + $0x20] sm:$0xff]
        %v416 = vld [vmem:[%s349 + $0x28] sm:$0xff]
        %v417 = vld [vmem:[%s349 + $0x30] sm:$0xff]
        %v418 = vld [vmem:[%s349 + $0x38] sm:$0xff]
        %v419 = vmul.f32 %v403, %v401
        %v420 = vmul.f32 %v404, %v401
        %v421 = vmul.f32 %v405, %v401
        %v422 = vmul.f32 %v406, %v401
        %v423 = vmul.f32 %v407, %v401
        %v424 = vmul.f32 %v408, %v401
        %v425 = vmul.f32 %v409, %v401
        %v426 = vmul.f32 %v410, %v401
        %v427 = vmul.f32 %v411, %v402
        %v428 = vmul.f32 %v412, %v402
        %v429 = vmul.f32 %v413, %v402
        %v430 = vmul.f32 %v414, %v402
        %v431 = vmul.f32 %v415, %v402
        %v432 = vmul.f32 %v416, %v402
        %v433 = vmul.f32 %v417, %v402
        %v434 = vmul.f32 %v418, %v402
        %v435 = vsub.f32 %v419, %v427
        %v436 = vsub.f32 %v420, %v428
        %v437 = vsub.f32 %v421, %v429
        %v438 = vsub.f32 %v422, %v430
        %v439 = vsub.f32 %v423, %v431
        %v440 = vsub.f32 %v424, %v432
        %v441 = vsub.f32 %v425, %v433
        %v442 = vsub.f32 %v426, %v434
        %vm443 = vcmask 130048
        %444 = vst.msk [vmem:[%s389] sm:$0xff] %vm443, %v435
        %445 = vst.msk [vmem:[%s389 + $0x8] sm:$0xff] %vm443, %v436
        %446 = vst.msk [vmem:[%s389 + $0x10] sm:$0xff] %vm443, %v437
        %447 = vst.msk [vmem:[%s389 + $0x18] sm:$0xff] %vm443, %v438
        %448 = vst.msk [vmem:[%s389 + $0x20] sm:$0xff] %vm443, %v439
        %449 = vst.msk [vmem:[%s389 + $0x28] sm:$0xff] %vm443, %v440
        %450 = vst.msk [vmem:[%s389 + $0x30] sm:$0xff] %vm443, %v441
        %451 = vst.msk [vmem:[%s389 + $0x38] sm:$0xff] %vm443, %v442
        %v452 = vmul.f32 %v403, %v402
        %v453 = vmul.f32 %v404, %v402
        %v454 = vmul.f32 %v405, %v402
        %v455 = vmul.f32 %v406, %v402
        %v456 = vmul.f32 %v407, %v402
        %v457 = vmul.f32 %v408, %v402
        %v458 = vmul.f32 %v409, %v402
        %v459 = vmul.f32 %v410, %v402
        %v460 = vmul.f32 %v411, %v401
        %v461 = vmul.f32 %v412, %v401
        %v462 = vmul.f32 %v413, %v401
        %v463 = vmul.f32 %v414, %v401
        %v464 = vmul.f32 %v415, %v401
        %v465 = vmul.f32 %v416, %v401
        %v466 = vmul.f32 %v417, %v401
        %v467 = vmul.f32 %v418, %v401
        %v468 = vadd.f32 %v452, %v460
        %v469 = vadd.f32 %v453, %v461
        %v470 = vadd.f32 %v454, %v462
        %v471 = vadd.f32 %v455, %v463
        %v472 = vadd.f32 %v456, %v464
        %v473 = vadd.f32 %v457, %v465
        %v474 = vadd.f32 %v458, %v466
        %v475 = vadd.f32 %v459, %v467
        %476 = vst.msk [vmem:[%s396] sm:$0xff] %vm443, %v468
        %477 = vst.msk [vmem:[%s396 + $0x8] sm:$0xff] %vm443, %v469
        %478 = vst.msk [vmem:[%s396 + $0x10] sm:$0xff] %vm443, %v470
        %479 = vst.msk [vmem:[%s396 + $0x18] sm:$0xff] %vm443, %v471
        %480 = vst.msk [vmem:[%s396 + $0x20] sm:$0xff] %vm443, %v472
        %481 = vst.msk [vmem:[%s396 + $0x28] sm:$0xff] %vm443, %v473
        %482 = vst.msk [vmem:[%s396 + $0x30] sm:$0xff] %vm443, %v474
        %483 = vst.msk [vmem:[%s396 + $0x38] sm:$0xff] %vm443, %v475
        %s484 = sand.u32 %s162, 1
        %s485 = scalar_lea.sflag [#allocation4], %s484
        %s486 = sand.u32 %s162, 1
        %s487 = smul.addr %s486, 64
        %s488 = scalar_lea.vmem [#allocation10], %s487
        %s489 = sand.u32 %s190, 1
        %s490 = scalar_lea.sflag [#allocation12], %s489
        %s491 = sand.u32 %s190, 1
        %s492 = smul.addr %s491, 64
        %s493 = scalar_lea.vmem [#allocation11], %s492
        // Predicated region
        $region53: #{tpu_custom_call.1} parent=35 // pred_check
          %p494 = pneg %p172
        $region54: #{tpu_custom_call.1} parent=35 // pred_check_branch
          %496 = sbr.rel (%p494) target = $region56
        $region55: #{tpu_custom_call.1} parent=35 // pred_region
          %s497 = smul.u32 8, %s37
          %499 = vsyncadd %s485, 0
          %s500 = smul.addr %s497, 2
          %s501 = sadd.s32 %s36, %s500
          %s502 = smul.addr %s501, 8
          %s503 = scalar_lea.hbm %s4, %s502
          %s504 = sshll.u32 %s488, 4
          %s505 = int_to_ptr.vmem [resolvable:$true] %s504
          %s506 = sshll.u32 %s503, 4
          %s507 = int_to_ptr.hbm [resolvable:$true] %s506
          %512 = dma.vmem_to_hbm [thread:$0]  %s505, 1024, %s507, %s485, 128, 256, 8
        $region56: #{tpu_custom_call.1} parent=35 // pred_fallthru
          _
        // Predicated region
        $region57: #{tpu_custom_call.1} parent=35 // pred_check
          %p513 = pneg %p200
        $region58: #{tpu_custom_call.1} parent=35 // pred_check_branch
          %515 = sbr.rel (%p513) target = $region60
        $region59: #{tpu_custom_call.1} parent=35 // pred_region
          %s516 = smul.u32 8, %s37
          %518 = vsyncadd %s490, 0
          %s519 = smul.addr %s516, 2
          %s520 = sadd.s32 %s36, %s519
          %s521 = smul.addr %s520, 8
          %s522 = scalar_lea.hbm %s5, %s521
          %s523 = sshll.u32 %s493, 4
          %s524 = int_to_ptr.vmem [resolvable:$true] %s523
          %s525 = sshll.u32 %s522, 4
          %s526 = int_to_ptr.hbm [resolvable:$true] %s525
          %531 = dma.vmem_to_hbm [thread:$0]  %s524, 1024, %s526, %s490, 128, 256, 8
        $region60: #{tpu_custom_call.1} parent=35 // pred_fallthru
          _
      $region36: #{tpu_custom_call.1} parent=5 // pred_fallthru
        _
      %p532 = scmp.le.s32.totalorder 2, %s27
      // Predicated region
      $region61: #{tpu_custom_call.1} parent=5 // pred_check
        %p533 = pneg %p532
      $region62: #{tpu_custom_call.1} parent=5 // pred_check_branch
        %535 = sbr.rel (%p533) target = $region64
      $region63: #{tpu_custom_call.1} parent=5 // pred_region
        %s536 = ssub.s32 %s27, 2
        // Predicated region
        $region65: #{tpu_custom_call.1} parent=63 // pred_check
          %p537 = pneg %p178
        $region66: #{tpu_custom_call.1} parent=63 // pred_check_branch
          %539 = sbr.rel (%p537) target = $region68
        $region67: #{tpu_custom_call.1} parent=63 // pred_region
          %s540 = sand.u32 %s163, 1
          %s541 = scalar_lea.sflag [#allocation4], %s540
          %s542 = sand.u32 %s163, 1
          %s543 = smul.addr %s542, 64
          %s544 = scalar_lea.vmem [#allocation10], %s543
          %546 = dma.done %s541, 1024
        $region68: #{tpu_custom_call.1} parent=63 // pred_fallthru
          _
        // Predicated region
        $region69: #{tpu_custom_call.1} parent=63 // pred_check
          %p547 = pneg %p206
        $region70: #{tpu_custom_call.1} parent=63 // pred_check_branch
          %549 = sbr.rel (%p547) target = $region72
        $region71: #{tpu_custom_call.1} parent=63 // pred_region
          %s550 = sand.u32 %s191, 1
          %s551 = scalar_lea.sflag [#allocation12], %s550
          %s552 = sand.u32 %s191, 1
          %s553 = smul.addr %s552, 64
          %s554 = scalar_lea.vmem [#allocation11], %s553
          %556 = dma.done %s551, 1024
        $region72: #{tpu_custom_call.1} parent=63 // pred_fallthru
          _
      $region64: #{tpu_custom_call.1} parent=5 // pred_fallthru
        _
    $region6: #{tpu_custom_call.1} parent=1 // loop_footer
      %s31 = sadd.s32 1, %s27
    $region7: #{tpu_custom_call.1} parent=1 // loop_footer_branch
      %26 = sbr.rel target = $region3
    $region8: #{tpu_custom_call.1} parent=1 // loop_exit
      _
    %557 = vsyncpa [#allocation3], 1
    %s558 = scalar_lea.sflag [#allocation3], 1
    %559 = vsyncpa %s558, 1
    %560 = vsyncpa [#allocation6], 1
    %s561 = scalar_lea.sflag [#allocation6], 1
    %562 = vsyncpa %s561, 1
    %563 = vsyncpa [#allocation9], 1
    %s564 = scalar_lea.sflag [#allocation9], 1
    %565 = vsyncpa %s564, 1
    %566 = vsyncpa [#allocation4], 1
    %s567 = scalar_lea.sflag [#allocation4], 1
    %568 = vsyncpa %s567, 1
    %569 = vsyncpa [#allocation12], 1
    %s570 = scalar_lea.sflag [#allocation12], 1
    %571 = vsyncpa %s570, 1

</llo_original>
